<compile_context>
chip_gen: v6e
topology: v6e:2x2x1
jax: 0.10.0
libtpu: 0.0.40
codegen_flags: <defaults>
</compile_context>

<pallas_src>
import functools

import jax
import jax.numpy as jnp
from jax.experimental import pallas as pl
from jax.experimental.pallas import tpu as pltpu


# ---------------------------------------------------------------------------
# Fused Pallas kernel: whole encoder in one call (no grid, full-array blocks).
# ---------------------------------------------------------------------------
def _fused_encoder_kernel(x_ref, *refs):
    """refs = (w0, b0, w1, b1, ..., out_ref).

    Computes, with block-diagonal (BN-folded) weights:
        h0 = x_flat                       # (B, C*L0)
        h_{l+1} = tanh(h_l @ W_l + b_l)   # W_l: (C*L_l, C*L_{l+1})
    and stores the final activation.  The layer loop is a static Python
    unroll (number of layers is known at trace time).
    """
    out_ref = refs[-1]
    wb_refs = refs[:-1]
    n_layers = len(wb_refs) // 2

    h = x_ref[...].astype(jnp.float32)          # keep f32 across all layers
    for l in range(n_layers):                   # static unroll
        w = wb_refs[2 * l][...]                 # (D_in, D_out) block-diagonal
        b = wb_refs[2 * l + 1][...]             # (1, D_out)
        y = jnp.dot(h, w, preferred_element_type=jnp.float32) + b
        h = jnp.tanh(y)                         # Dropout = identity (eval)
    out_ref[...] = h.astype(out_ref.dtype)


# ---------------------------------------------------------------------------
# Host-side parameter preparation: BN folding + block-diagonal weights.
# ---------------------------------------------------------------------------
def _fold_bn_and_blockdiag(layer, batchnorm, eps):
    w = layer["weight"]                         # (C, L_out, L_in)
    b = layer["bias"]                           # (C, L_out)
    C, L_out, L_in = w.shape

    if batchnorm:
        scale = layer["gamma"] / jnp.sqrt(layer["running_var"] + eps)   # (C,)
        shift = layer["beta"] - layer["running_mean"] * scale           # (C,)
    else:
        scale = jnp.ones((C,), jnp.float32)
        shift = jnp.zeros((C,), jnp.float32)

    # Fold BN affine into the linear: y = scale*(x@w^T + b) + shift
    w_s = w * scale[:, None, None]                       # (C, L_out, L_in)
    b_s = b * scale[:, None] + shift[:, None]            # (C, L_out)

    # Block-diagonal weight:  W_bd[c*L_in + j, c*L_out + k] = w_s[c, k, j]
    wt = jnp.transpose(w_s, (0, 2, 1))                   # (C, L_in, L_out)
    eye = jnp.eye(C, dtype=wt.dtype)
    w_bd = jnp.einsum("cjk,cd->cjdk", wt, eye).reshape(C * L_in, C * L_out)
    b_flat = b_s.reshape(1, C * L_out)
    return w_bd.astype(jnp.float32), b_flat.astype(jnp.float32)


# ---------------------------------------------------------------------------
# Full encoder wrapper.
# ---------------------------------------------------------------------------
def vanilla_encoder_forward(x, params, *, batchnorm=True, eps=1e-5):
    """x: (B, n_features, seq_len) -> (B, n_features, layersizes[-1])."""
    B, C, L0 = x.shape
    x_flat = x.reshape(B, C * L0)                # contiguous collapse, no transpose

    fused = [_fold_bn_and_blockdiag(layer, batchnorm, eps) for layer in params]
    out_dim = fused[-1][0].shape[1]              # C * layersizes[-1]

    inputs = [x_flat]
    vmem_spec = pl.BlockSpec(memory_space=pltpu.MemorySpace.VMEM)
    in_specs = [vmem_spec]
    for w_bd, b_flat in fused:
        inputs += [w_bd, b_flat]
        in_specs += [vmem_spec, vmem_spec]

    out_flat = pl.pallas_call(
        _fused_encoder_kernel,
        out_shape=jax.ShapeDtypeStruct((B, out_dim), x.dtype),
        in_specs=in_specs,
        out_specs=vmem_spec,
    )(*inputs)

    return out_flat.reshape(B, C, out_dim // C)


# ---------------------------------------------------------------------------
# Deterministic synthetic parameter init (shapes from module __init__)
# ---------------------------------------------------------------------------
def init_params(key, seq_len, n_features, layersizes, *, batchnorm=True):
    params = []
    in_f = seq_len
    for lsize in layersizes:
        key, kw, kb, kg, kbt, km, kv = jax.random.split(key, 7)
        bound = 1.0 / (in_f ** 0.5)
        layer = {
            "weight": jax.random.uniform(kw, (n_features, lsize, in_f),
                                         jnp.float32, -bound, bound),
            "bias": jax.random.uniform(kb, (n_features, lsize),
                                       jnp.float32, -bound, bound),
        }
        if batchnorm:
            layer["gamma"] = jax.random.uniform(kg, (n_features,), jnp.float32, 0.5, 1.5)
            layer["beta"] = jax.random.uniform(kbt, (n_features,), jnp.float32, -0.1, 0.1)
            layer["running_mean"] = jax.random.uniform(km, (n_features,), jnp.float32, -0.1, 0.1)
            layer["running_var"] = jax.random.uniform(kv, (n_features,), jnp.float32, 0.5, 1.5)
        params.append(layer)
        in_f = lsize
    return params


# ---------------------------------------------------------------------------
# Pure-JAX reference (mirrors PyTorch eval-mode forward) for verification
# ---------------------------------------------------------------------------
def reference_forward(x, params, *, batchnorm=True, eps=1e-5):
    h = x  # (B, C, L)
    for layer in params:
        y = jnp.einsum("bcj,ckj->bck", h, layer["weight"]) + layer["bias"][None]
        if batchnorm:
            y = ((y - layer["running_mean"][None, :, None])
                 / jnp.sqrt(layer["running_var"][None, :, None] + eps)
                 * layer["gamma"][None, :, None]
                 + layer["beta"][None, :, None])
        h = jnp.tanh(y)
    return h


if __name__ == "__main__":
    # Small shapes consistent with the module: batch=2, n_features=4, seq_len=8
    B, N_FEATURES, SEQ_LEN = 2, 4, 8
    LAYERSIZES = (16, 8)
    BATCHNORM = True

    key = jax.random.PRNGKey(0)
    key, kx = jax.random.split(key)
    x = jax.random.normal(kx, (B, N_FEATURES, SEQ_LEN), jnp.float32)

    params = init_params(key, SEQ_LEN, N_FEATURES, LAYERSIZES, batchnorm=BATCHNORM)

    run = jax.jit(functools.partial(vanilla_encoder_forward, batchnorm=BATCHNORM))
    out = run(x, params)
    out = jax.block_until_ready(out)

    ref = reference_forward(x, params, batchnorm=BATCHNORM)
    assert out.shape == (B, N_FEATURES, LAYERSIZES[-1]), out.shape
    assert jnp.allclose(out, ref, rtol=1e-5, atol=1e-5), "mismatch vs reference"

    print("KERNEL_OK")
</pallas_src>

<mosaic_0001>
module attributes {stable_mosaic.version = 11 : i64} {
  func.func @_fused_encoder_kernel(%arg0: memref<2x32xf32, #tpu.memory_space<vmem>>, %arg1: memref<32x64xf32, #tpu.memory_space<vmem>>, %arg2: memref<1x64xf32, #tpu.memory_space<vmem>>, %arg3: memref<64x32xf32, #tpu.memory_space<vmem>>, %arg4: memref<1x32xf32, #tpu.memory_space<vmem>>, %arg5: memref<2x32xf32, #tpu.memory_space<vmem>>) attributes {dimension_semantics = [], scalar_prefetch = 0 : i64, scratch_operands = 0 : i64, tpu.core_type = #tpu.core_type<tc>} {
    %c0 = arith.constant 0 : index
    %c0_0 = arith.constant 0 : index
    %0 = vector.load %arg0[%c0, %c0_0] : memref<2x32xf32, #tpu.memory_space<vmem>>, vector<2x32xf32>
    %c0_1 = arith.constant 0 : index
    %c0_2 = arith.constant 0 : index
    %1 = vector.load %arg1[%c0_1, %c0_2] : memref<32x64xf32, #tpu.memory_space<vmem>>, vector<32x64xf32>
    %c0_3 = arith.constant 0 : index
    %c0_4 = arith.constant 0 : index
    %2 = vector.load %arg2[%c0_3, %c0_4] : memref<1x64xf32, #tpu.memory_space<vmem>>, vector<1x64xf32>
    %cst = arith.constant dense<0.000000e+00> : vector<2x64xf32>
    %3 = tpu.matmul %0, %1, %cst {dimension_numbers = #tpu.dot_dimension_numbers<[1], [0], [0], [1], [0, 0, 1, 1], [], []>} : vector<2x32xf32>, vector<32x64xf32>, vector<2x64xf32> -> vector<2x64xf32>
    %4 = vector.broadcast %2 : vector<1x64xf32> to vector<2x64xf32>
    %5 = arith.addf %3, %4 : vector<2x64xf32>
    %6 = math.tanh %5 : vector<2x64xf32>
    %c0_5 = arith.constant 0 : index
    %c0_6 = arith.constant 0 : index
    %7 = vector.load %arg3[%c0_5, %c0_6] : memref<64x32xf32, #tpu.memory_space<vmem>>, vector<64x32xf32>
    %c0_7 = arith.constant 0 : index
    %c0_8 = arith.constant 0 : index
    %8 = vector.load %arg4[%c0_7, %c0_8] : memref<1x32xf32, #tpu.memory_space<vmem>>, vector<1x32xf32>
    %cst_9 = arith.constant dense<0.000000e+00> : vector<2x32xf32>
    %9 = tpu.matmul %6, %7, %cst_9 {dimension_numbers = #tpu.dot_dimension_numbers<[1], [0], [0], [1], [0, 0, 1, 1], [], []>} : vector<2x64xf32>, vector<64x32xf32>, vector<2x32xf32> -> vector<2x32xf32>
    %10 = vector.broadcast %8 : vector<1x32xf32> to vector<2x32xf32>
    %11 = arith.addf %9, %10 : vector<2x32xf32>
    %12 = math.tanh %11 : vector<2x32xf32>
    %c0_10 = arith.constant 0 : index
    %c0_11 = arith.constant 0 : index
    %13 = vector.load %arg5[%c0_10, %c0_11] : memref<2x32xf32, #tpu.memory_space<vmem>>, vector<2x32xf32>
    tpu.vector_store %arg5[%c0_10, %c0_11], %12 {strides = array<i32>} : memref<2x32xf32, #tpu.memory_space<vmem>>, vector<2x32xf32>,
    return
  }
}

</mosaic_0001>

<llo_original>
// kernel: vanilla_encoder_forward.1
$region0: #{vanilla_encoder_forward.1}
  #allocation0 [shape = 'u32[]', space=smem, size = 0x4, offset = 0x4, fixed_abs, tag = 'smem constant byte address 0x4 - core index']
  #allocation1 [shape = 'u32[144,128]{1,0:T(1,128)}', space=vmem, size = 0x12000, scoped, tag = 'internal scratch']
  %s0 = inlined_call_operand.vmem [shape: f32[2,32], index: 0, kind: input, shape index: {}]
  %s1 = inlined_call_operand.vmem [shape: f32[32,64], index: 1, kind: input, shape index: {}]
  %s2 = inlined_call_operand.vmem [shape: f32[1,64], index: 2, kind: input, shape index: {}]
  %s3 = inlined_call_operand.vmem [shape: f32[64,32], index: 3, kind: input, shape index: {}]
  %s4 = inlined_call_operand.vmem [shape: f32[1,32], index: 4, kind: input, shape index: {}]
  %s5 = inlined_call_operand.vmem [shape: f32[2,32], index: 5, kind: output, shape index: {}]
  %s6 = sld [smem:[#allocation0]]
  $region30: #{vanilla_encoder_forward.1} parent=0
    _
  %s8 = ssub.s32 1, %s6
  %s9 = scalar_select 0, %s8, %s6
  // Predicated region
  $region2: #{vanilla_encoder_forward.1} parent=0 // pred_check
    _
  $region3: #{vanilla_encoder_forward.1} parent=0 // pred_check_branch
    %11 = sbr.rel (0) target = $region5
  $region4: #{vanilla_encoder_forward.1} parent=0 // pred_region
    _
  $region5: #{vanilla_encoder_forward.1} parent=0 // pred_fallthru
    _
  // Predicated region
  $region6: #{vanilla_encoder_forward.1} parent=0 // pred_check
    _
  $region7: #{vanilla_encoder_forward.1} parent=0 // pred_check_branch
    %13 = sbr.rel (0) target = $region9
  $region8: #{vanilla_encoder_forward.1} parent=0 // pred_region
    _
  $region9: #{vanilla_encoder_forward.1} parent=0 // pred_fallthru
    _
  // Predicated region
  $region10: #{vanilla_encoder_forward.1} parent=0 // pred_check
    _
  $region11: #{vanilla_encoder_forward.1} parent=0 // pred_check_branch
    %15 = sbr.rel (0) target = $region13
  $region12: #{vanilla_encoder_forward.1} parent=0 // pred_region
    _
  $region13: #{vanilla_encoder_forward.1} parent=0 // pred_fallthru
    _
  // Predicated region
  $region14: #{vanilla_encoder_forward.1} parent=0 // pred_check
    _
  $region15: #{vanilla_encoder_forward.1} parent=0 // pred_check_branch
    %17 = sbr.rel (0) target = $region17
  $region16: #{vanilla_encoder_forward.1} parent=0 // pred_region
    _
  $region17: #{vanilla_encoder_forward.1} parent=0 // pred_fallthru
    _
  // Predicated region
  $region18: #{vanilla_encoder_forward.1} parent=0 // pred_check
    _
  $region19: #{vanilla_encoder_forward.1} parent=0 // pred_check_branch
    %19 = sbr.rel (0) target = $region21
  $region20: #{vanilla_encoder_forward.1} parent=0 // pred_region
    _
  $region21: #{vanilla_encoder_forward.1} parent=0 // pred_fallthru
    _
  %v20 = vld [vmem:[%s0] sm:$0x3]
  %v21 = vld [vmem:[%s1] sm:$0xff]
  %v22 = vld [vmem:[%s1 + $0x8] sm:$0xff]
  %v23 = vld [vmem:[%s1 + $0x10] sm:$0xff]
  %v24 = vld [vmem:[%s1 + $0x18] sm:$0xff]
  %v25 = vld [vmem:[%s2] sm:$0x1]
  %v27 = vlaneseq
  %v28 = vshrl.u32 %v27, 7
  %v29 = vsub.s32 0, %v28
  %v30 = vrot.slane %v25, %v29
  %vm32 = vcmask 261120
  %v34 = vsel %vm32, %v20, 0
  %36 = vmatprep.subr.mxu0 0.0
  %37 = vmatpush1.msra.mxu0 0.0
  %38 = vmatprep.subr.mxu0 0.0
  %39 = vmatpush1.msra.mxu0 0.0
  %40 = vmatprep.subr.mxu0 0.0
  %41 = vmatpush1.msra.mxu0 0.0
  %42 = vmatprep.subr.mxu0 0.0
  %43 = vmatpush1.msra.mxu0 0.0
  %44 = vmatprep.subr.mxu0 0.0
  %45 = vmatpush1.msra.mxu0 0.0
  %46 = vmatprep.subr.mxu0 0.0
  %47 = vmatpush1.msra.mxu0 0.0
  %48 = vmatprep.subr.mxu0 0.0
  %49 = vmatpush1.msra.mxu0 0.0
  %50 = vmatprep.subr.mxu0 0.0
  %51 = vmatpush1.msra.mxu0 0.0
  %52 = vmatprep.subr.mxu0 0.0
  %53 = vmatpush1.msra.mxu0 0.0
  %54 = vmatprep.subr.mxu0 0.0
  %55 = vmatpush1.msra.mxu0 0.0
  %56 = vmatprep.subr.mxu0 0.0
  %57 = vmatpush1.msra.mxu0 0.0
  %58 = vmatprep.subr.mxu0 0.0
  %59 = vmatpush1.msra.mxu0 0.0
  %60 = vmatprep.subr.mxu0 0.0
  %61 = vmatpush1.msra.mxu0 %v24
  %62 = vmatprep.subr.mxu0 0.0
  %63 = vmatpush1.msra.mxu0 %v23
  %64 = vmatprep.subr.mxu0 0.0
  %65 = vmatpush1.msra.mxu0 %v22
  %66 = vmatprep.subr.mxu0 0.0
  %67 = vmatpush1.msra.mxu0 %v21
  %68 = vmatprep.subr.mxu0 0.0
  %69 = vmatpush2.msra.mxu0 0.0
  %70 = vmatprep.subr.mxu0 0.0
  %71 = vmatpush2.msra.mxu0 0.0
  %72 = vmatprep.subr.mxu0 0.0
  %73 = vmatpush2.msra.mxu0 0.0
  %74 = vmatprep.subr.mxu0 0.0
  %75 = vmatpush2.msra.mxu0 0.0
  %76 = vmatprep.subr.mxu0 0.0
  %77 = vmatpush2.msra.mxu0 0.0
  %78 = vmatprep.subr.mxu0 0.0
  %79 = vmatpush2.msra.mxu0 0.0
  %80 = vmatprep.subr.mxu0 0.0
  %81 = vmatpush2.msra.mxu0 0.0
  %82 = vmatprep.subr.mxu0 0.0
  %83 = vmatpush2.msra.mxu0 0.0
  %84 = vmatprep.subr.mxu0 0.0
  %85 = vmatpush2.msra.mxu0 0.0
  %86 = vmatprep.subr.mxu0 0.0
  %87 = vmatpush2.msra.mxu0 0.0
  %88 = vmatprep.subr.mxu0 0.0
  %89 = vmatpush2.msra.mxu0 0.0
  %90 = vmatprep.subr.mxu0 0.0
  %91 = vmatpush2.msra.mxu0 0.0
  %92 = vmatprep.subr.mxu0 0.0
  %93 = vmatpush2.msra.mxu0 0.0
  %94 = vmatprep.subr.mxu0 0.0
  %95 = vmatpush2.msra.mxu0 0.0
  %96 = vmatprep.subr.mxu0 0.0
  %97 = vmatpush2.msra.mxu0 0.0
  %98 = vmatprep.subr.mxu0 0.0
  %99 = vmatpush2.msra.mxu0 0.0
  %100 = vmatprep.mubr.f32.mxu0 0.0
  %101 = vmatmul.mubr.f32.gmra.mxu0 %v34
  %v102 = vpop.f32.mrf.mxu0
  %v103 = vadd.f32 %v30, %v102
  %v104 = vpop.f32.mrf.mxu0
  %105 = vdwg.mxu0
  %v106 = vtanh.pop %v103
  %v107 = vld [vmem:[%s3] sm:$0xff]
  %v108 = vld [vmem:[%s3 + $0x8] sm:$0xff]
  %v109 = vld [vmem:[%s3 + $0x10] sm:$0xff]
  %v110 = vld [vmem:[%s3 + $0x18] sm:$0xff]
  %v111 = vld [vmem:[%s3 + $0x20] sm:$0xff]
  %v112 = vld [vmem:[%s3 + $0x28] sm:$0xff]
  %v113 = vld [vmem:[%s3 + $0x30] sm:$0xff]
  %v114 = vld [vmem:[%s3 + $0x38] sm:$0xff]
  %v115 = vld [vmem:[%s4] sm:$0x1]
  %v117 = vlaneseq
  %v118 = vshrl.u32 %v117, 7
  %v119 = vsub.s32 0, %v118
  %v120 = vrot.slane %v115, %v119
  %vm122 = vcmask 523264
  %v124 = vsel %vm122, %v106, 0
  %126 = vmatprep.subr.mxu0 0.0
  %127 = vmatpush1.msra.mxu0 0.0
  %128 = vmatprep.subr.mxu0 0.0
  %129 = vmatpush1.msra.mxu0 0.0
  %130 = vmatprep.subr.mxu0 0.0
  %131 = vmatpush1.msra.mxu0 0.0
  %132 = vmatprep.subr.mxu0 0.0
  %133 = vmatpush1.msra.mxu0 0.0
  %134 = vmatprep.subr.mxu0 0.0
  %135 = vmatpush1.msra.mxu0 0.0
  %136 = vmatprep.subr.mxu0 0.0
  %137 = vmatpush1.msra.mxu0 0.0
  %138 = vmatprep.subr.mxu0 0.0
  %139 = vmatpush1.msra.mxu0 0.0
  %140 = vmatprep.subr.mxu0 0.0
  %141 = vmatpush1.msra.mxu0 0.0
  %142 = vmatprep.subr.mxu0 0.0
  %143 = vmatpush1.msra.mxu0 %v114
  %144 = vmatprep.subr.mxu0 0.0
  %145 = vmatpush1.msra.mxu0 %v113
  %146 = vmatprep.subr.mxu0 0.0
  %147 = vmatpush1.msra.mxu0 %v112
  %148 = vmatprep.subr.mxu0 0.0
  %149 = vmatpush1.msra.mxu0 %v111
  %150 = vmatprep.subr.mxu0 0.0
  %151 = vmatpush1.msra.mxu0 %v110
  %152 = vmatprep.subr.mxu0 0.0
  %153 = vmatpush1.msra.mxu0 %v109
  %154 = vmatprep.subr.mxu0 0.0
  %155 = vmatpush1.msra.mxu0 %v108
  %156 = vmatprep.subr.mxu0 0.0
  %157 = vmatpush1.msra.mxu0 %v107
  %158 = vmatprep.subr.mxu0 0.0
  %159 = vmatpush2.msra.mxu0 0.0
  %160 = vmatprep.subr.mxu0 0.0
  %161 = vmatpush2.msra.mxu0 0.0
  %162 = vmatprep.subr.mxu0 0.0
  %163 = vmatpush2.msra.mxu0 0.0
  %164 = vmatprep.subr.mxu0 0.0
  %165 = vmatpush2.msra.mxu0 0.0
  %166 = vmatprep.subr.mxu0 0.0
  %167 = vmatpush2.msra.mxu0 0.0
  %168 = vmatprep.subr.mxu0 0.0
  %169 = vmatpush2.msra.mxu0 0.0
  %170 = vmatprep.subr.mxu0 0.0
  %171 = vmatpush2.msra.mxu0 0.0
  %172 = vmatprep.subr.mxu0 0.0
  %173 = vmatpush2.msra.mxu0 0.0
  %174 = vmatprep.subr.mxu0 0.0
  %175 = vmatpush2.msra.mxu0 0.0
  %176 = vmatprep.subr.mxu0 0.0
  %177 = vmatpush2.msra.mxu0 0.0
  %178 = vmatprep.subr.mxu0 0.0
  %179 = vmatpush2.msra.mxu0 0.0
  %180 = vmatprep.subr.mxu0 0.0
  %181 = vmatpush2.msra.mxu0 0.0
  %182 = vmatprep.subr.mxu0 0.0
  %183 = vmatpush2.msra.mxu0 0.0
  %184 = vmatprep.subr.mxu0 0.0
  %185 = vmatpush2.msra.mxu0 0.0
  %186 = vmatprep.subr.mxu0 0.0
  %187 = vmatpush2.msra.mxu0 0.0
  %188 = vmatprep.subr.mxu0 0.0
  %189 = vmatpush2.msra.mxu0 0.0
  %190 = vmatprep.mubr.f32.mxu0 0.0
  %191 = vmatmul.mubr.f32.gmra.mxu0 %v124
  %v192 = vpop.f32.mrf.mxu0
  %v193 = vadd.f32 %v120, %v192
  %v194 = vpop.f32.mrf.mxu0
  %195 = vdwg.mxu0
  %v196 = vtanh.pop %v193
  %vm197 = vcmask 254976
  %198 = vst.msk [vmem:[%s5] sm:$0x3] %vm197, %v196
  // Predicated region
  $region22: #{vanilla_encoder_forward.1} parent=0 // pred_check
    _
  $region23: #{vanilla_encoder_forward.1} parent=0 // pred_check_branch
    %200 = sbr.rel (0) target = $region25
  $region24: #{vanilla_encoder_forward.1} parent=0 // pred_region
    _
  $region25: #{vanilla_encoder_forward.1} parent=0 // pred_fallthru
    _
  // Predicated region
  $region26: #{vanilla_encoder_forward.1} parent=0 // pred_check
    _
  $region27: #{vanilla_encoder_forward.1} parent=0 // pred_check_branch
    %202 = sbr.rel (0) target = $region29
  $region28: #{vanilla_encoder_forward.1} parent=0 // pred_region
    _
  $region29: #{vanilla_encoder_forward.1} parent=0 // pred_fallthru
    _

</llo_original>
